<compile_context>
chip_gen: v5e
topology: v5e:2x2
jax: 0.10.0
libtpu: 0.0.40
codegen_flags: <defaults>
</compile_context>

<pallas_src>
import functools

import jax
import jax.numpy as jnp
from jax import lax
from jax.experimental import pallas as pl
from jax.experimental.pallas import tpu as pltpu

NUM_CLASSES = 54
C = NUM_CLASSES + 1  # 55 channels (softmax / one-hot dimension)


def _round_up(x, m):
    return (x + m - 1) // m * m


def _dice_parts_kernel(preds_ref, tgt_ref, out_ref, *,
                       hw_total, tile_hw, half_tiles, need_mask):
    # preds_ref: (1, C, tile_hw) f32 logits
    # tgt_ref:   (1, 1, tile_hw) i32 labels
    # out_ref:   (1, 1, C, 3) f32 packed [intersection, prob_sum, target_sum];
    #            resident across the innermost (h) grid axis -> used as the accumulator.
    h = pl.program_id(2)

    @pl.when(h == 0)
    def _init():
        out_ref[...] = jnp.zeros_like(out_ref)

    p = preds_ref[0]  # (C, tile_hw) — channels on sublanes, pixels on lanes
    t = tgt_ref[0]    # (1, tile_hw) int32

    # Softmax over the channel (sublane) axis: one reciprocal per pixel (EUP) + a VPU
    # multiply, instead of C divides per pixel.
    m = jnp.max(p, axis=0, keepdims=True)                     # (1, tile_hw)
    e = jnp.exp(p - m)                                        # (C, tile_hw)
    denom = jnp.sum(e, axis=0, keepdims=True)                 # (1, tile_hw)
    probs = e * pl.reciprocal(denom, approx=False)            # (C, tile_hw)

    # Boolean one-hot mask via a (C, 1) sublane iota broadcast against the label row
    # (no (C, tile_hw) iota materialized per step).
    ch = lax.broadcasted_iota(jnp.int32, (C, 1), 0)
    hit = ch == t                                             # (C, tile_hw) bool

    if need_mask:
        # Ragged tail and/or fully out-of-range extra tile (odd tile count): padded /
        # unspecified pixels must not contribute (their softmax would otherwise inflate
        # psum, and the tail data is uninitialized VMEM after the pad removal).
        s_id = pl.program_id(1)
        tile_idx = s_id * half_tiles + h                      # UNclamped global tile index
        lane = lax.broadcasted_iota(jnp.int32, (1, tile_hw), 1)
        valid = (tile_idx * tile_hw + lane) < hw_total        # (1, tile_hw) bool
        hit = hit & valid
        probs_for_sum = jnp.where(valid, probs, 0.0)
    else:
        probs_for_sum = probs

    inter = jnp.sum(jnp.where(hit, probs, 0.0), axis=1, keepdims=True)  # (C, 1)
    psum = jnp.sum(probs_for_sum, axis=1, keepdims=True)                # (C, 1)
    tsum = jnp.sum(jnp.where(hit, 1.0, 0.0), axis=1, keepdims=True)     # (C, 1)

    # Single fused RMW of the resident (C, 3) accumulator block (instead of three
    # lane-width-1 partial stores).
    col = lax.broadcasted_iota(jnp.int32, (C, 3), 1)
    upd = jnp.where(col == 0, inter, jnp.where(col == 1, psum, tsum))   # (C, 3)
    out_ref[...] += upd[None, None]


def dice_loss(preds, targets, smooth=1.0, tile_hw=16384):
    """preds: (N, C, H, W) float32 logits; targets: (N, H, W) int labels in [0, C)."""
    N, Cin, H, W = preds.shape
    assert Cin == C
    HW = H * W

    # Default tile_hw=16384: ~3.5 MB per preds buffer (~7 MB double-buffered), safe under
    # every generation's scoped-VMEM default; vmem_limit_bytes below is sized from the tile
    # so 32768 can be passed on v6e/v7x if profiling shows exposed DMA.
    tile_hw = _round_up(min(tile_hw, _round_up(HW, 128)), 128)
    num_tiles = -(-HW // tile_hw)
    half_tiles = (num_tiles + 1) // 2
    # Mask needed iff the last tile is ragged or the 2-way split has a fully-OOB extra step.
    need_mask = (HW % tile_hw != 0) or (num_tiles % 2 != 0)

    # No jnp.pad: the last block may extend past HW (unspecified tail), masked in-kernel.
    preds_flat = preds.reshape(N, C, HW)
    tgt_flat = targets.astype(jnp.int32).reshape(N, 1, HW)

    def in_map(n, s, h):
        # Clamp so the odd-tile-count extra step re-reads an in-bounds block; its
        # contribution is zeroed by the in-kernel `valid` mask (which uses the UNclamped
        # tile index).
        t = jnp.minimum(s * half_tiles + h, num_tiles - 1)
        return (n, 0, t)

    kernel = functools.partial(_dice_parts_kernel, hw_total=HW, tile_hw=tile_hw,
                               half_tiles=half_tiles, need_mask=need_mask)

    # Double-buffered inputs + headroom; clamp to [32 MiB, 60 MiB] (under v7x physical).
    block_bytes = (C * tile_hw + tile_hw) * 4
    vmem_limit = min(max(2 * block_bytes + (8 << 20), 32 << 20), 60 << 20)

    packed = pl.pallas_call(
        kernel,
        out_shape=jax.ShapeDtypeStruct((N, 2, C, 3), jnp.float32),
        grid_spec=pltpu.PrefetchScalarGridSpec(
            num_scalar_prefetch=0,
            grid=(N, 2, half_tiles),
            in_specs=[
                pl.BlockSpec((1, C, tile_hw), in_map),
                pl.BlockSpec((1, 1, tile_hw), in_map),
            ],
            out_specs=pl.BlockSpec((1, 1, C, 3), lambda n, s, h: (n, s, 0, 0)),
        ),
        compiler_params=pltpu.CompilerParams(
            dimension_semantics=("parallel", "parallel", "arbitrary"),
            vmem_limit_bytes=vmem_limit,
        ),
    )(preds_flat, tgt_flat)

    parts = jnp.sum(packed, axis=1)       # (N, C, 3): sum the two parallel halves
    inter = parts[:, :, 0]
    psum = parts[:, :, 1]
    tsum = parts[:, :, 2]
    dice = (2.0 * inter + smooth) / (psum + tsum + smooth)   # (N, C)
    return 1.0 - jnp.mean(dice)


def _dice_loss_ref(preds, targets, smooth=1.0):
    # Pure-JAX reference mirroring the PyTorch module exactly.
    probs = jax.nn.softmax(preds, axis=1)
    one_hot = jax.nn.one_hot(targets, C, dtype=jnp.float32)          # (N, H, W, C)
    one_hot = jnp.transpose(one_hot, (0, 3, 1, 2))                   # (N, C, H, W)
    inter = jnp.sum(probs * one_hot, axis=(2, 3))
    dice = (2.0 * inter + smooth) / (jnp.sum(probs, axis=(2, 3))
                                     + jnp.sum(one_hot, axis=(2, 3)) + smooth)
    return 1.0 - jnp.mean(dice)


if __name__ == "__main__":
    key = jax.random.PRNGKey(0)
    k1, k2, k3, k4 = jax.random.split(key, 4)

    # Main config: batch=2, 55 classes, 16x16 spatial.
    N, H, W = 2, 16, 16
    preds = jax.random.normal(k1, (N, C, H, W), dtype=jnp.float32)
    targets = jax.random.randint(k2, (N, H, W), 0, C, dtype=jnp.int32)

    loss = jax.block_until_ready(dice_loss(preds, targets))
    ref = jax.block_until_ready(_dice_loss_ref(preds, targets))
    assert jnp.allclose(loss, ref, atol=1e-5, rtol=1e-5), (loss, ref)

    # Multi-tile, evenly-divisible path (no masking code generated).
    loss2 = jax.block_until_ready(dice_loss(preds, targets, tile_hw=128))
    assert jnp.allclose(loss2, ref, atol=1e-5, rtol=1e-5), (loss2, ref)

    # Ragged tail + odd tile count + N == 1 (exercises OOB-tile clamping and lane masking,
    # i.e. the no-pad path and the 2-way megacore split with a single batch element).
    preds3 = jax.random.normal(k3, (1, C, 19, 19), dtype=jnp.float32)
    targets3 = jax.random.randint(k4, (1, 19, 19), 0, C, dtype=jnp.int32)
    loss3 = jax.block_until_ready(dice_loss(preds3, targets3, tile_hw=128))
    ref3 = jax.block_until_ready(_dice_loss_ref(preds3, targets3))
    assert jnp.allclose(loss3, ref3, atol=1e-5, rtol=1e-5), (loss3, ref3)

    print("KERNEL_OK")
</pallas_src>

<mosaic_0001>
module attributes {stable_mosaic.version = 11 : i64} {
  func.func @_dice_parts_kernel(%arg0: i32, %arg1: i32, %arg2: i32, %arg3: memref<1x55x256xf32, #tpu.memory_space<vmem>>, %arg4: memref<1x1x256xi32, #tpu.memory_space<vmem>>, %arg5: memref<1x1x55x3xf32, #tpu.memory_space<vmem>>) attributes {dimension_semantics = [#tpu.dimension_semantics<parallel>, #tpu.dimension_semantics<parallel>, #tpu.dimension_semantics<arbitrary>], iteration_bounds = array<i64: 2, 2, 1>, scalar_prefetch = 0 : i64, scratch_operands = 0 : i64, tpu.core_type = #tpu.core_type<tc>, window_params = [{transform_indices = @transform_0, window_bounds = array<i64: 1, 55, 256>}, {transform_indices = @transform_1, window_bounds = array<i64: 1, 1, 256>}, {transform_indices = @transform_2, window_bounds = array<i64: 1, 1, 55, 3>}]} {
    %c0_i32 = arith.constant 0 : i32
    %0 = arith.cmpi eq, %arg2, %c0_i32 : i32
    %1 = arith.extui %0 : i1 to i32
    %c0_i32_0 = arith.constant 0 : i32
    %2 = arith.cmpi ne, %1, %c0_i32_0 : i32
    scf.if %2 {
      %cst_25 = arith.constant 0.000000e+00 : f32
      %63 = vector.broadcast %cst_25 : f32 to vector<1x1x55x3xf32>
      %c0_26 = arith.constant 0 : index
      %c0_27 = arith.constant 0 : index
      %c0_28 = arith.constant 0 : index
      %c0_29 = arith.constant 0 : index
      %64 = vector.load %arg5[%c0_26, %c0_27, %c0_28, %c0_29] : memref<1x1x55x3xf32, #tpu.memory_space<vmem>>, vector<1x1x55x3xf32>
      tpu.vector_store %arg5[%c0_26, %c0_27, %c0_28, %c0_29], %63 {strides = array<i32>} : memref<1x1x55x3xf32, #tpu.memory_space<vmem>>, vector<1x1x55x3xf32>,
    } else {
    }
    %c0 = arith.constant 0 : index
    %c0_1 = arith.constant 0 : index
    %c0_2 = arith.constant 0 : index
    %3 = vector.load %arg3[%c0, %c0_1, %c0_2] : memref<1x55x256xf32, #tpu.memory_space<vmem>>, vector<1x55x256xf32>
    %4 = vector.shape_cast %3 : vector<1x55x256xf32> to vector<55x256xf32>
    %c0_3 = arith.constant 0 : index
    %c0_4 = arith.constant 0 : index
    %c0_5 = arith.constant 0 : index
    %5 = vector.load %arg4[%c0_3, %c0_4, %c0_5] : memref<1x1x256xi32, #tpu.memory_space<vmem>>, vector<1x1x256xi32>
    %6 = vector.shape_cast %5 : vector<1x1x256xi32> to vector<1x256xi32>
    %cst = arith.constant dense<0xFF800000> : vector<256xf32>
    %7 = vector.multi_reduction <maximumf>, %4, %cst [0] : vector<55x256xf32> to vector<256xf32>
    %8 = vector.shape_cast %7 : vector<256xf32> to vector<1x256xf32>
    %9 = vector.broadcast %8 : vector<1x256xf32> to vector<55x256xf32>
    %10 = arith.subf %4, %9 : vector<55x256xf32>
    %11 = math.exp %10 : vector<55x256xf32>
    %cst_6 = arith.constant dense<0.000000e+00> : vector<256xf32>
    %12 = vector.multi_reduction <add>, %11, %cst_6 [0] : vector<55x256xf32> to vector<256xf32>
    %13 = vector.shape_cast %12 : vector<256xf32> to vector<1x256xf32>
    %14 = tpu.reciprocal %13 : vector<1x256xf32> -> vector<1x256xf32>
    %15 = vector.broadcast %14 : vector<1x256xf32> to vector<55x256xf32>
    %16 = arith.mulf %11, %15 : vector<55x256xf32>
    %17 = tpu.iota {dimensions = array<i32: 0>} : vector<55x1xi32>
    %18 = vector.broadcast %17 : vector<55x1xi32> to vector<55x256xi32>
    %19 = vector.broadcast %6 : vector<1x256xi32> to vector<55x256xi32>
    %20 = arith.cmpi eq, %18, %19 : vector<55x256xi32>
    %c1_i32 = arith.constant 1 : i32
    %21 = arith.muli %arg1, %c1_i32 : i32
    %22 = arith.addi %21, %arg2 : i32
    %23 = tpu.iota {dimensions = array<i32: 1>} : vector<1x256xi32>
    %c256_i32 = arith.constant 256 : i32
    %24 = arith.muli %22, %c256_i32 : i32
    %25 = vector.broadcast %24 : i32 to vector<1x256xi32>
    %26 = arith.addi %25, %23 : vector<1x256xi32>
    %c256_i32_7 = arith.constant 256 : i32
    %27 = vector.broadcast %c256_i32_7 : i32 to vector<1x256xi32>
    %28 = arith.cmpi slt, %26, %27 : vector<1x256xi32>
    %29 = vector.broadcast %28 : vector<1x256xi1> to vector<55x256xi1>
    %30 = arith.andi %20, %29 : vector<55x256xi1>
    %cst_8 = arith.constant 0.000000e+00 : f32
    %31 = vector.shape_cast %28 : vector<1x256xi1> to vector<1x256xi1>
    %32 = vector.broadcast %31 : vector<1x256xi1> to vector<55x256xi1>
    %33 = vector.broadcast %cst_8 : f32 to vector<55x256xf32>
    %34 = arith.select %32, %16, %33 : vector<55x256xi1>, vector<55x256xf32>
    %cst_9 = arith.constant 0.000000e+00 : f32
    %35 = vector.broadcast %cst_9 : f32 to vector<55x256xf32>
    %36 = arith.select %30, %16, %35 : vector<55x256xi1>, vector<55x256xf32>
    %cst_10 = arith.constant dense<0.000000e+00> : vector<55xf32>
    %37 = vector.multi_reduction <add>, %36, %cst_10 [1] : vector<55x256xf32> to vector<55xf32>
    %38 = vector.shape_cast %37 : vector<55xf32> to vector<55x1xf32>
    %cst_11 = arith.constant dense<0.000000e+00> : vector<55xf32>
    %39 = vector.multi_reduction <add>, %34, %cst_11 [1] : vector<55x256xf32> to vector<55xf32>
    %40 = vector.shape_cast %39 : vector<55xf32> to vector<55x1xf32>
    %cst_12 = arith.constant 1.000000e+00 : f32
    %cst_13 = arith.constant 0.000000e+00 : f32
    %41 = vector.broadcast %cst_12 : f32 to vector<55x256xf32>
    %42 = vector.broadcast %cst_13 : f32 to vector<55x256xf32>
    %43 = arith.select %30, %41, %42 : vector<55x256xi1>, vector<55x256xf32>
    %cst_14 = arith.constant dense<0.000000e+00> : vector<55xf32>
    %44 = vector.multi_reduction <add>, %43, %cst_14 [1] : vector<55x256xf32> to vector<55xf32>
    %45 = vector.shape_cast %44 : vector<55xf32> to vector<55x1xf32>
    %46 = tpu.iota {dimensions = array<i32: 1>} : vector<55x3xi32>
    %c0_i32_15 = arith.constant 0 : i32
    %47 = vector.broadcast %c0_i32_15 : i32 to vector<55x3xi32>
    %48 = arith.cmpi eq, %46, %47 : vector<55x3xi32>
    %c1_i32_16 = arith.constant 1 : i32
    %49 = vector.broadcast %c1_i32_16 : i32 to vector<55x3xi32>
    %50 = arith.cmpi eq, %46, %49 : vector<55x3xi32>
    %51 = vector.shape_cast %40 : vector<55x1xf32> to vector<55x1xf32>
    %52 = vector.broadcast %51 : vector<55x1xf32> to vector<55x3xf32>
    %53 = vector.shape_cast %45 : vector<55x1xf32> to vector<55x1xf32>
    %54 = vector.broadcast %53 : vector<55x1xf32> to vector<55x3xf32>
    %55 = arith.select %50, %52, %54 : vector<55x3xi1>, vector<55x3xf32>
    %56 = vector.shape_cast %38 : vector<55x1xf32> to vector<55x1xf32>
    %57 = vector.broadcast %56 : vector<55x1xf32> to vector<55x3xf32>
    %58 = arith.select %48, %57, %55 : vector<55x3xi1>, vector<55x3xf32>
    %c0_17 = arith.constant 0 : index
    %c0_18 = arith.constant 0 : index
    %c0_19 = arith.constant 0 : index
    %c0_20 = arith.constant 0 : index
    %59 = vector.load %arg5[%c0_17, %c0_18, %c0_19, %c0_20] : memref<1x1x55x3xf32, #tpu.memory_space<vmem>>, vector<1x1x55x3xf32>
    %60 = vector.shape_cast %58 : vector<55x3xf32> to vector<1x1x55x3xf32>
    %61 = arith.addf %59, %60 : vector<1x1x55x3xf32>
    %c0_21 = arith.constant 0 : index
    %c0_22 = arith.constant 0 : index
    %c0_23 = arith.constant 0 : index
    %c0_24 = arith.constant 0 : index
    %62 = vector.load %arg5[%c0_21, %c0_22, %c0_23, %c0_24] : memref<1x1x55x3xf32, #tpu.memory_space<vmem>>, vector<1x1x55x3xf32>
    tpu.vector_store %arg5[%c0_21, %c0_22, %c0_23, %c0_24], %61 {strides = array<i32>} : memref<1x1x55x3xf32, #tpu.memory_space<vmem>>, vector<1x1x55x3xf32>,
    return
  }
  func.func @transform_0(%arg0: i32, %arg1: i32, %arg2: i32) -> (i32, i32, i32) {
    %c1_i32 = arith.constant 1 : i32
    %0 = arith.muli %arg1, %c1_i32 : i32
    %1 = arith.addi %0, %arg2 : i32
    %c0_i32 = arith.constant 0 : i32
    %2 = arith.minsi %1, %c0_i32 : i32
    %c0_i32_0 = arith.constant 0 : i32
    %c0_i32_1 = arith.constant 0 : i32
    return %arg0, %c0_i32_0, %2 : i32, i32, i32
  }
  func.func @transform_1(%arg0: i32, %arg1: i32, %arg2: i32) -> (i32, i32, i32) {
    %c1_i32 = arith.constant 1 : i32
    %0 = arith.muli %arg1, %c1_i32 : i32
    %1 = arith.addi %0, %arg2 : i32
    %c0_i32 = arith.constant 0 : i32
    %2 = arith.minsi %1, %c0_i32 : i32
    %c0_i32_0 = arith.constant 0 : i32
    %c0_i32_1 = arith.constant 0 : i32
    return %arg0, %c0_i32_0, %2 : i32, i32, i32
  }
  func.func @transform_2(%arg0: i32, %arg1: i32, %arg2: i32) -> (i32, i32, i32, i32) {
    %c0_i32 = arith.constant 0 : i32
    %c0_i32_0 = arith.constant 0 : i32
    %c0_i32_1 = arith.constant 0 : i32
    return %arg0, %arg1, %c0_i32, %c0_i32_0 : i32, i32, i32, i32
  }
}

</mosaic_0001>

<llo_original>
// kernel: tpu_custom_call.1
$region0: #{tpu_custom_call.1}
  #allocation0 [shape = 'u32[]', space=smem, size = 0x4, offset = 0x4, fixed_abs, tag = 'smem constant byte address 0x4 - core index']
  #allocation1 [shape = 'u32[72,128]{1,0:T(1,128)}', space=vmem, size = 0x9000, scoped, tag = 'internal scratch']
  %s0 = inlined_call_operand.vmem [shape: f32[2,55,256], index: 0, kind: input, shape index: {}]
  %s1 = inlined_call_operand.vmem [shape: s32[2,1,256], index: 1, kind: input, shape index: {}]
  %s2 = inlined_call_operand.vmem [shape: f32[2,2,55,3], index: 2, kind: output, shape index: {}]
  %s3 = sld [smem:[#allocation0]]
  $region45: #{tpu_custom_call.1} parent=0
    _
  %s5 = ssub.s32 1, %s3
  %s6 = scalar_select 0, %s5, %s3
  loop: start=0, step=1, limit=6
  $region2: #{tpu_custom_call.1} parent=0 // loop_pre_header
    _
  $region3: #{tpu_custom_call.1} parent=0 // loop_header
    %s8 = sphi 0, %s12
    %p9 = scmp.ge.s32.totalorder %s8, 6
    %s15 = sphi 0, %s34
    %s16 = sphi 0, %s30
    %s17 = sphi 0, %s26
    %s18 = sphi 0, %s15
    %s19 = sphi 0, %s16
    %s20 = sphi 0, %s17
    %s21 = sphi 0, %s18
    %s22 = sphi 0, %s19
    %s23 = sphi 0, %s20
    %s45 = sphi 0, %s47
    %s48 = sphi 0, %s45
    %s49 = sphi 0, %s48
    %s65 = sphi 0, %s49
    %s79 = sphi 0, %s81
    %s82 = sphi 0, %s79
    %s83 = sphi 0, %s82
    %s99 = sphi 0, %s83
    %s107 = sphi 0, %s109
    %s110 = sphi 0, %s107
    %s111 = sphi 0, %s110
    %s127 = sphi 0, %s111
  $region4: #{tpu_custom_call.1} parent=0 // loop_header_branch
    %11 = sbr.rel (%p9) target = $region8
  $region5: #{tpu_custom_call.1} parent=0 // loop_body
    %s13 = ssub.s32 %s8, 1
    %s14 = ssub.s32 %s8, 2
    %s24 = sadd.s32 1, %s17
    %p25 = scmp.ge.s32.totalorder %s24, 1
    %s26 = scalar_select %p25, 0, %s24
    %s27 = sadd.s32 1, %s16
    %s28 = scalar_select %p25, %s27, %s16
    %p29 = scmp.ge.s32.totalorder %s28, 2
    %s30 = scalar_select %p29, 0, %s28
    %s31 = sadd.s32 1, %s15
    %s32 = scalar_select %p29, %s31, %s15
    %p33 = scmp.ge.s32.totalorder %s32, 2
    %s34 = scalar_select %p33, 0, %s32
    %s35 = sadd.s32 %s16, %s17
    %p36 = scmp.lt.s32.totalorder %s35, 0
    %s37 = scalar_select %p36, %s35, 0
    %s38 = sadd.s32 %s30, %s26
    %p39 = scmp.lt.s32.totalorder %s38, 0
    %s40 = scalar_select %p39, %s38, 0
    %s41 = ssub.s32 %s15, %s34
    %s42 = ssub.s32 %s37, %s40
    %s43 = sor.u32 %s41, %s42
    %p44 = scmp.eq.s32.totalorder %s43, 0
    %s46 = sadd.s32 %s45, 1
    %s47 = scalar_select %p44, %s45, %s46
    %p50 = pneg %p44
    %p51 = scmp.eq.s32.totalorder %s8, 3
    %p52 = por %p50, %p51
    %p53 = scmp.ne.s32.totalorder %s45, %s48
    %p54 = scmp.eq.s32.totalorder %s8, 0
    %p55 = por %p53, %p54
    %p56 = scmp.ne.s32.totalorder %s45, %s48
    %p57 = scmp.eq.s32.totalorder %s13, 3
    %p58 = por %p56, %p57
    %p59 = scmp.ne.s32.totalorder %s48, %s49
    %p60 = scmp.eq.s32.totalorder %s13, 0
    %p61 = por %p59, %p60
    %p62 = scmp.ne.s32.totalorder %s48, %s49
    %p63 = scmp.eq.s32.totalorder %s14, 3
    %p64 = por %p62, %p63
    %p66 = scmp.ne.s32.totalorder %s49, %s65
    %p67 = scmp.eq.s32.totalorder %s14, 0
    %p68 = por %p66, %p67
    %s69 = sadd.s32 %s16, %s17
    %p70 = scmp.lt.s32.totalorder %s69, 0
    %s71 = scalar_select %p70, %s69, 0
    %s72 = sadd.s32 %s30, %s26
    %p73 = scmp.lt.s32.totalorder %s72, 0
    %s74 = scalar_select %p73, %s72, 0
    %s75 = ssub.s32 %s15, %s34
    %s76 = ssub.s32 %s71, %s74
    %s77 = sor.u32 %s75, %s76
    %p78 = scmp.eq.s32.totalorder %s77, 0
    %s80 = sadd.s32 %s79, 1
    %s81 = scalar_select %p78, %s79, %s80
    %p84 = pneg %p78
    %p85 = scmp.eq.s32.totalorder %s8, 3
    %p86 = por %p84, %p85
    %p87 = scmp.ne.s32.totalorder %s79, %s82
    %p88 = scmp.eq.s32.totalorder %s8, 0
    %p89 = por %p87, %p88
    %p90 = scmp.ne.s32.totalorder %s79, %s82
    %p91 = scmp.eq.s32.totalorder %s13, 3
    %p92 = por %p90, %p91
    %p93 = scmp.ne.s32.totalorder %s82, %s83
    %p94 = scmp.eq.s32.totalorder %s13, 0
    %p95 = por %p93, %p94
    %p96 = scmp.ne.s32.totalorder %s82, %s83
    %p97 = scmp.eq.s32.totalorder %s14, 3
    %p98 = por %p96, %p97
    %p100 = scmp.ne.s32.totalorder %s83, %s99
    %p101 = scmp.eq.s32.totalorder %s14, 0
    %p102 = por %p100, %p101
    %s103 = ssub.s32 %s15, %s34
    %s104 = ssub.s32 %s16, %s30
    %s105 = sor.u32 %s103, %s104
    %p106 = scmp.eq.s32.totalorder %s105, 0
    %s108 = sadd.s32 %s107, 1
    %s109 = scalar_select %p106, %s107, %s108
    %p112 = pneg %p106
    %p113 = scmp.eq.s32.totalorder %s8, 3
    %p114 = por %p112, %p113
    %p115 = scmp.ne.s32.totalorder %s107, %s110
    %p116 = scmp.eq.s32.totalorder %s8, 0
    %p117 = por %p115, %p116
    %p118 = scmp.ne.s32.totalorder %s107, %s110
    %p119 = scmp.eq.s32.totalorder %s13, 3
    %p120 = por %p118, %p119
    %p121 = scmp.ne.s32.totalorder %s110, %s111
    %p122 = scmp.eq.s32.totalorder %s13, 0
    %p123 = por %p121, %p122
    %p124 = scmp.ne.s32.totalorder %s110, %s111
    %p125 = scmp.eq.s32.totalorder %s14, 3
    %p126 = por %p124, %p125
    %p128 = scmp.ne.s32.totalorder %s111, %s127
    %p129 = scmp.eq.s32.totalorder %s14, 0
    %p130 = por %p128, %p129
    %p131 = scmp.le.s32.totalorder 1, %s8
    %p132 = scmp.lt.s32.totalorder %s8, 5
    %p133 = pnand %p131, %p132
    %p134 = pneg %p133
    // Predicated region
    $region9: #{tpu_custom_call.1} parent=5 // pred_check
      _
    $region10: #{tpu_custom_call.1} parent=5 // pred_check_branch
      %136 = sbr.rel (%p133) target = $region12
    $region11: #{tpu_custom_call.1} parent=5 // pred_region
      %s137 = ssub.s32 %s8, 1
    $region12: #{tpu_custom_call.1} parent=5 // pred_fallthru
      _
    %p138 = scmp.lt.s32.totalorder %s8, 4
    // Predicated region
    $region13: #{tpu_custom_call.1} parent=5 // pred_check
      %p139 = pneg %p138
    $region14: #{tpu_custom_call.1} parent=5 // pred_check_branch
      %141 = sbr.rel (%p139) target = $region16
    $region15: #{tpu_custom_call.1} parent=5 // pred_region
      // Predicated region
      $region17: #{tpu_custom_call.1} parent=15 // pred_check
        %p142 = pneg %p55
      $region18: #{tpu_custom_call.1} parent=15 // pred_check_branch
        %144 = sbr.rel (%p142) target = $region20
      $region19: #{tpu_custom_call.1} parent=15 // pred_region
        %s145 = sadd.s32 %s16, %s17
        %p146 = scmp.lt.s32.totalorder %s145, 0
        %s147 = scalar_select %p146, %s145, 0
        %s148 = smul.u32 2, %s147
        %p149 = scmp.lt.s32.totalorder %s15, 1
        %s150 = scalar_select %p149, %s15, 1
        %p151 = scmp.lt.s32.totalorder %s148, 1
        %s152 = scalar_select %p151, %s148, 1
        %s153 = smul.addr %s150, 14
        %s154 = sadd.s32 %s152, %s153
        %s155 = smul.addr %s154, 8
        %s156 = scalar_lea.vmem %s0, %s155
        %s157 = sadd.s32 %s16, %s17
        %p158 = scmp.lt.s32.totalorder %s157, 0
        %s159 = scalar_select %p158, %s157, 0
        %s160 = smul.u32 2, %s159
      $region20: #{tpu_custom_call.1} parent=15 // pred_fallthru
        _
      // Predicated region
      $region21: #{tpu_custom_call.1} parent=15 // pred_check
        %p161 = pneg %p89
      $region22: #{tpu_custom_call.1} parent=15 // pred_check_branch
        %163 = sbr.rel (%p161) target = $region24
      $region23: #{tpu_custom_call.1} parent=15 // pred_region
        %s164 = sadd.s32 %s16, %s17
        %p165 = scmp.lt.s32.totalorder %s164, 0
        %s166 = scalar_select %p165, %s164, 0
        %s167 = smul.u32 2, %s166
        %p168 = scmp.lt.s32.totalorder %s15, 1
        %s169 = scalar_select %p168, %s15, 1
        %p170 = scmp.lt.s32.totalorder %s167, 1
        %s171 = scalar_select %p170, %s167, 1
        %s172 = smul.addr %s169, 2
        %s173 = sadd.s32 %s171, %s172
        %s174 = scalar_lea.vmem %s1, %s173
        %s175 = sadd.s32 %s16, %s17
        %p176 = scmp.lt.s32.totalorder %s175, 0
        %s177 = scalar_select %p176, %s175, 0
        %s178 = smul.u32 2, %s177
      $region24: #{tpu_custom_call.1} parent=15 // pred_fallthru
        _
    $region16: #{tpu_custom_call.1} parent=5 // pred_fallthru
      _
    %p179 = scmp.le.s32.totalorder 1, %s8
    %p180 = scmp.lt.s32.totalorder %s8, 5
    %p181 = pnand %p179, %p180
    %p182 = pneg %p181
    // Predicated region
    $region25: #{tpu_custom_call.1} parent=5 // pred_check
      _
    $region26: #{tpu_custom_call.1} parent=5 // pred_check_branch
      %184 = sbr.rel (%p181) target = $region28
    $region27: #{tpu_custom_call.1} parent=5 // pred_region
      %s185 = ssub.s32 %s8, 1
      %s186 = sadd.s32 %s19, %s20
      %p187 = scmp.lt.s32.totalorder %s186, 0
      %s188 = scalar_select %p187, %s186, 0
      %s189 = smul.u32 2, %s188
      %p190 = scmp.lt.s32.totalorder %s18, 1
      %s191 = scalar_select %p190, %s18, 1
      %p192 = scmp.lt.s32.totalorder %s189, 1
      %s193 = scalar_select %p192, %s189, 1
      %s194 = smul.addr %s191, 14
      %s195 = sadd.s32 %s193, %s194
      %s196 = smul.addr %s195, 8
      %s197 = scalar_lea.vmem %s0, %s196
      %p198 = pneg %p61
      %p199 = pneg %p58
      %s200 = sadd.s32 %s19, %s20
      %p201 = scmp.lt.s32.totalorder %s200, 0
      %s202 = scalar_select %p201, %s200, 0
      %s203 = smul.u32 2, %s202
      %p204 = scmp.lt.s32.totalorder %s18, 1
      %s205 = scalar_select %p204, %s18, 1
      %p206 = scmp.lt.s32.totalorder %s203, 1
      %s207 = scalar_select %p206, %s203, 1
      %s208 = smul.addr %s205, 2
      %s209 = sadd.s32 %s207, %s208
      %s210 = scalar_lea.vmem %s1, %s209
      %p211 = pneg %p95
      %p212 = pneg %p92
      %p213 = pneg %p123
      %p214 = pneg %p120
      %p215 = scmp.lt.s32.totalorder %s18, 1
      %s216 = scalar_select %p215, %s18, 1
      %p217 = scmp.lt.s32.totalorder %s19, 1
      %s218 = scalar_select %p217, %s19, 1
      %s219 = smul.addr %s218, 7
      %s220 = smul.addr %s216, 14
      %s221 = sadd.s32 %s219, %s220
      %s222 = smul.addr %s221, 8
      %s223 = scalar_lea.vmem %s2, %s222
      %s224 = sadd.s32 %s19, %s20
      %p225 = scmp.lt.s32.totalorder %s224, 0
      %s226 = scalar_select %p225, %s224, 0
      %s227 = smul.u32 2, %s226
      %p228 = scmp.lt.s32.totalorder %s18, 1
      %s229 = scalar_select %p228, %s18, 1
      %p230 = scmp.lt.s32.totalorder %s227, 1
      %s231 = scalar_select %p230, %s227, 1
      %s232 = smul.addr %s229, 14
      %s233 = sadd.s32 %s231, %s232
      %s234 = smul.addr %s233, 8
      %s235 = scalar_lea.vmem %s0, %s234
      %s236 = sadd.s32 %s19, %s20
      %p237 = scmp.lt.s32.totalorder %s236, 0
      %s238 = scalar_select %p237, %s236, 0
      %s239 = smul.u32 2, %s238
      %s240 = sadd.s32 %s19, %s20
      %p241 = scmp.lt.s32.totalorder %s240, 0
      %s242 = scalar_select %p241, %s240, 0
      %s243 = smul.u32 2, %s242
      %p244 = scmp.lt.s32.totalorder %s18, 1
      %s245 = scalar_select %p244, %s18, 1
      %p246 = scmp.lt.s32.totalorder %s243, 1
      %s247 = scalar_select %p246, %s243, 1
      %s248 = smul.addr %s245, 2
      %s249 = sadd.s32 %s247, %s248
      %s250 = scalar_lea.vmem %s1, %s249
      %s251 = sadd.s32 %s19, %s20
      %p252 = scmp.lt.s32.totalorder %s251, 0
      %s253 = scalar_select %p252, %s251, 0
      %s254 = smul.u32 2, %s253
      %p255 = scmp.lt.s32.totalorder %s18, 1
      %s256 = scalar_select %p255, %s18, 1
      %p257 = scmp.lt.s32.totalorder %s19, 1
      %s258 = scalar_select %p257, %s19, 1
      %s259 = smul.addr %s258, 7
      %s260 = smul.addr %s256, 14
      %s261 = sadd.s32 %s259, %s260
      %s262 = smul.addr %s261, 8
      %s263 = scalar_lea.vmem %s2, %s262
      %p264 = scmp.eq.s32.totalorder %s20, 0
      // Predicated region
      $region29: #{tpu_custom_call.1} parent=27 // pred_check
        %p265 = pneg %p264
      $region30: #{tpu_custom_call.1} parent=27 // pred_check_branch
        %267 = sbr.rel (%p265) target = $region32
      $region31: #{tpu_custom_call.1} parent=27 // pred_region
        %vm268 = vcmask 23552
        %269 = vst.msk [vmem:[%s263] sm:$0xff] %vm268, 0.0
        %270 = vst.msk [vmem:[%s263 + $0x8] sm:$0xff] %vm268, 0.0
        %271 = vst.msk [vmem:[%s263 + $0x10] sm:$0xff] %vm268, 0.0
        %272 = vst.msk [vmem:[%s263 + $0x18] sm:$0xff] %vm268, 0.0
        %273 = vst.msk [vmem:[%s263 + $0x20] sm:$0xff] %vm268, 0.0
        %274 = vst.msk [vmem:[%s263 + $0x28] sm:$0xff] %vm268, 0.0
        %vm275 = vcmask 22528
        %276 = vst.msk [vmem:[%s263 + $0x30] sm:$0x7f] %vm275, 0.0
      $region32: #{tpu_custom_call.1} parent=27 // pred_fallthru
        _
      %v277 = vld [vmem:[%s235] sm:$0xff]
      %v278 = vld [vmem:[%s235 + $0x8] sm:$0xff]
      %v279 = vld [vmem:[%s235 + $0x10] sm:$0xff]
      %v280 = vld [vmem:[%s235 + $0x18] sm:$0xff]
      %v281 = vld [vmem:[%s235 + $0x20] sm:$0xff]
      %v282 = vld [vmem:[%s235 + $0x28] sm:$0xff]
      %v283 = vld [vmem:[%s235 + $0x30] sm:$0xff]
      %v284 = vld [vmem:[%s235 + $0x38] sm:$0xff]
      %v285 = vld [vmem:[%s235 + $0x40] sm:$0xff]
      %v286 = vld [vmem:[%s235 + $0x48] sm:$0xff]
      %v287 = vld [vmem:[%s235 + $0x50] sm:$0xff]
      %v288 = vld [vmem:[%s235 + $0x58] sm:$0xff]
      %v289 = vld [vmem:[%s235 + $0x60] sm:$0x7f]
      %v290 = vld [vmem:[%s235 + $0x68] sm:$0x7f]
      %v291 = vld [vmem:[%s250] sm:$0x3]
      %v292 = vmax.f32 %v277, %v281
      %v293 = vmax.f32 %v279, %v283
      %v294 = vmax.f32 %v292, %v285
      %v295 = vmax.f32 %v293, %v287
      %vm296 = vcmask 1046528
      %v297 = vsel %vm296, %v289, -inf
      %v298 = vmax.f32 %v294, %v297
      %v299 = vmax.f32 %v298, %v295
      %v300 = vrot.slane %v299, 4
      %v301 = vmax.f32 %v299, %v300
      %v302 = vrot.slane %v301, 2
      %v303 = vmax.f32 %v301, %v302
      %v304 = vrot.slane %v303, 1
      %v305 = vmax.f32 %v303, %v304
      %v306 = vmax.f32 %v278, %v282
      %v307 = vmax.f32 %v280, %v284
      %v308 = vmax.f32 %v306, %v286
      %v309 = vmax.f32 %v307, %v288
      %v310 = vsel %vm296, %v290, -inf
      %v311 = vmax.f32 %v308, %v310
      %v312 = vmax.f32 %v311, %v309
      %v313 = vrot.slane %v312, 4
      %v314 = vmax.f32 %v312, %v313
      %v315 = vrot.slane %v314, 2
      %v316 = vmax.f32 %v314, %v315
      %v317 = vrot.slane %v316, 1
      %v318 = vmax.f32 %v316, %v317
      %v319 = vsub.f32 %v277, %v305
      %v320 = vsub.f32 %v278, %v318
      %v321 = vsub.f32 %v279, %v305
      %v322 = vsub.f32 %v280, %v318
      %v323 = vsub.f32 %v281, %v305
      %v324 = vsub.f32 %v282, %v318
      %v325 = vsub.f32 %v283, %v305
      %v326 = vsub.f32 %v284, %v318
      %v327 = vsub.f32 %v285, %v305
      %v328 = vsub.f32 %v286, %v318
      %v329 = vsub.f32 %v287, %v305
      %v330 = vsub.f32 %v288, %v318
      %v331 = vsub.f32 %v289, %v305
      %v332 = vsub.f32 %v290, %v318
      %v333 = vmul.f32 %v319, 1.442695
      %v334 = vpow.pop %v333
      %v335 = vmul.f32 %v320, 1.442695
      %v336 = vpow.pop %v335
      %v337 = vmul.f32 %v321, 1.442695
      %v338 = vpow.pop %v337
      %v339 = vmul.f32 %v322, 1.442695
      %v340 = vpow.pop %v339
      %v341 = vmul.f32 %v323, 1.442695
      %v342 = vpow.pop %v341
      %v343 = vmul.f32 %v324, 1.442695
      %v344 = vpow.pop %v343
      %v345 = vmul.f32 %v325, 1.442695
      %v346 = vpow.pop %v345
      %v347 = vmul.f32 %v326, 1.442695
      %v348 = vpow.pop %v347
      %v349 = vmul.f32 %v327, 1.442695
      %v350 = vpow.pop %v349
      %v351 = vmul.f32 %v328, 1.442695
      %v352 = vpow.pop %v351
      %v353 = vmul.f32 %v329, 1.442695
      %v354 = vpow.pop %v353
      %v355 = vmul.f32 %v330, 1.442695
      %v356 = vpow.pop %v355
      %v357 = vmul.f32 %v331, 1.442695
      %v358 = vpow.pop %v357
      %v359 = vmul.f32 %v332, 1.442695
      %v360 = vpow.pop %v359
      %v361 = vadd.f32 %v334, %v338
      %v362 = vadd.f32 %v361, %v342
      %v363 = vadd.f32 %v362, %v346
      %v364 = vadd.f32 %v363, %v350
      %v365 = vadd.f32 %v364, %v354
      %v366 = vsel %vm296, %v358, 0.0
      %v367 = vadd.f32 %v365, %v366
      %v368 = vrot.slane %v367, 4
      %v369 = vadd.f32 %v367, %v368
      %v370 = vrot.slane %v369, 2
      %v371 = vadd.f32 %v369, %v370
      %v372 = vrot.slane %v371, 1
      %v373 = vadd.f32 %v371, %v372
      %v374 = vadd.f32 %v336, %v340
      %v375 = vadd.f32 %v374, %v344
      %v376 = vadd.f32 %v375, %v348
      %v377 = vadd.f32 %v376, %v352
      %v378 = vadd.f32 %v377, %v356
      %v379 = vsel %vm296, %v360, 0.0
      %v380 = vadd.f32 %v378, %v379
      %v381 = vrot.slane %v380, 4
      %v382 = vadd.f32 %v380, %v381
      %v383 = vrot.slane %v382, 2
      %v384 = vadd.f32 %v382, %v383
      %v385 = vrot.slane %v384, 1
      %v386 = vadd.f32 %v384, %v385
      %v387 = vrcp.pop %v373
      %v388 = vmul.f32 %v373, %v387
      %v389 = vsub.f32 1.0, %v388
      %v390 = vmul.f32 %v387, %v389
      %v391 = vadd.f32 %v387, %v390
      %vm392 = vweird.f32 %v373
      %vm393 = vweird.f32 %v387
      %vm394 = vmor %vm392, %vm393
      %v395 = vsel %vm394, %v387, %v391
      %v396 = vand.u32 2147483647, %v373
      %vm397 = vcmp.eq.f32.partialorder %v396, 8.507059e+37
      %v398 = vand.u32 %v373, 2147483648
      %v399 = vor.u32 1.1754944e-38, %v398
      %v400 = vsel %vm397, %v399, %v395
      %v401 = vrcp.pop %v386
      %v402 = vmul.f32 %v386, %v401
      %v403 = vsub.f32 1.0, %v402
      %v404 = vmul.f32 %v401, %v403
      %v405 = vadd.f32 %v401, %v404
      %vm406 = vweird.f32 %v386
      %vm407 = vweird.f32 %v401
      %vm408 = vmor %vm406, %vm407
      %v409 = vsel %vm408, %v401, %v405
      %v410 = vand.u32 2147483647, %v386
      %vm411 = vcmp.eq.f32.partialorder %v410, 8.507059e+37
      %v412 = vand.u32 %v386, 2147483648
      %v413 = vor.u32 1.1754944e-38, %v412
      %v414 = vsel %vm411, %v413, %v409
      %v415 = vmul.f32 %v334, %v400
      %v416 = vmul.f32 %v336, %v414
      %v417 = vmul.f32 %v338, %v400
      %v418 = vmul.f32 %v340, %v414
      %v419 = vmul.f32 %v342, %v400
      %v420 = vmul.f32 %v344, %v414
      %v421 = vmul.f32 %v346, %v400
      %v422 = vmul.f32 %v348, %v414
      %v423 = vmul.f32 %v350, %v400
      %v424 = vmul.f32 %v352, %v414
      %v425 = vmul.f32 %v354, %v400
      %v426 = vmul.f32 %v356, %v414
      %v427 = vmul.f32 %v358, %v400
      %v428 = vmul.f32 %v360, %v414
      %v429 = vlaneseq
      %v430 = vshrl.u32 %v429, 7
      %v431 = vadd.s32 %v430, 8
      %v432 = vadd.s32 %v430, 16
      %v433 = vadd.s32 %v430, 24
      %v434 = vadd.s32 %v430, 32
      %v435 = vadd.s32 %v430, 40
      %v436 = vadd.s32 %v430, 48
      %v437 = vperm.slane %v291, 0
      %v438 = vperm.slane %v291, 1
      %vm439 = vcmp.eq.s32.totalorder %v430, %v437
      %vm440 = vcmp.eq.s32.totalorder %v430, %v438
      %vm441 = vcmp.eq.s32.totalorder %v431, %v437
      %vm442 = vcmp.eq.s32.totalorder %v431, %v438
      %vm443 = vcmp.eq.s32.totalorder %v432, %v437
      %vm444 = vcmp.eq.s32.totalorder %v432, %v438
      %vm445 = vcmp.eq.s32.totalorder %v433, %v437
      %vm446 = vcmp.eq.s32.totalorder %v433, %v438
      %vm447 = vcmp.eq.s32.totalorder %v434, %v437
      %vm448 = vcmp.eq.s32.totalorder %v434, %v438
      %vm449 = vcmp.eq.s32.totalorder %v435, %v437
      %vm450 = vcmp.eq.s32.totalorder %v435, %v438
      %vm451 = vcmp.eq.s32.totalorder %v436, %v437
      %vm452 = vcmp.eq.s32.totalorder %v436, %v438
      %s453 = sadd.s32 %s19, %s20
      %v454 = vlaneseq
      %v455 = vand.u32 %v454, 127
      %v456 = vadd.s32 %v455, 128
      %s457 = smul.u32 %s453, 256
      %v458 = vstv %s457
      %v459 = vadd.s32 %v458, %v455
      %v460 = vadd.s32 %v458, %v456
      %vm461 = vcmp.lt.s32.totalorder %v459, 256
      %vm462 = vcmp.lt.s32.totalorder %v460, 256
      %v463 = vsel %vm461, 1, 0
      %v464 = vsel %vm462, 1, 0
      %vm465 = vcmp.eq.s32.totalorder %v463, 1
      %vm466 = vcmp.eq.s32.totalorder %v464, 1
      %vm467 = vmand %vm439, %vm465
      %vm468 = vmand %vm440, %vm466
      %vm469 = vmand %vm441, %vm465
      %vm470 = vmand %vm442, %vm466
      %vm471 = vmand %vm443, %vm465
      %vm472 = vmand %vm444, %vm466
      %vm473 = vmand %vm445, %vm465
      %vm474 = vmand %vm446, %vm466
      %vm475 = vmand %vm447, %vm465
      %vm476 = vmand %vm448, %vm466
      %vm477 = vmand %vm449, %vm465
      %vm478 = vmand %vm450, %vm466
      %vm479 = vmand %vm451, %vm465
      %vm480 = vmand %vm452, %vm466
      %v481 = vsel %vm465, %v415, 0.0
      %v482 = vsel %vm466, %v416, 0.0
      %v483 = vsel %vm465, %v417, 0.0
      %v484 = vsel %vm466, %v418, 0.0
      %v485 = vsel %vm465, %v419, 0.0
      %v486 = vsel %vm466, %v420, 0.0
      %v487 = vsel %vm465, %v421, 0.0
      %v488 = vsel %vm466, %v422, 0.0
      %v489 = vsel %vm465, %v423, 0.0
      %v490 = vsel %vm466, %v424, 0.0
      %v491 = vsel %vm465, %v425, 0.0
      %v492 = vsel %vm466, %v426, 0.0
      %v493 = vsel %vm465, %v427, 0.0
      %v494 = vsel %vm466, %v428, 0.0
      %v495 = vsel %vm467, %v415, 0.0
      %v496 = vsel %vm468, %v416, 0.0
      %v497 = vsel %vm469, %v417, 0.0
      %v498 = vsel %vm470, %v418, 0.0
      %v499 = vsel %vm471, %v419, 0.0
      %v500 = vsel %vm472, %v420, 0.0
      %v501 = vsel %vm473, %v421, 0.0
      %v502 = vsel %vm474, %v422, 0.0
      %v503 = vsel %vm475, %v423, 0.0
      %v504 = vsel %vm476, %v424, 0.0
      %v505 = vsel %vm477, %v425, 0.0
      %v506 = vsel %vm478, %v426, 0.0
      %v507 = vsel %vm479, %v427, 0.0
      %v508 = vsel %vm480, %v428, 0.0
      %v509 = vadd.f32 %v495, %v496
      %510 = vadd.xlane.f32.xlu0 %v509
      %v511 = vpop.xlane.xlu0 %510
      %v512 = vadd.f32 %v497, %v498
      %513 = vadd.xlane.f32.xlu0 %v512
      %v514 = vpop.xlane.xlu0 %513
      %v515 = vadd.f32 %v499, %v500
      %516 = vadd.xlane.f32.xlu0 %v515
      %v517 = vpop.xlane.xlu0 %516
      %v518 = vadd.f32 %v501, %v502
      %519 = vadd.xlane.f32.xlu0 %v518
      %v520 = vpop.xlane.xlu0 %519
      %v521 = vadd.f32 %v503, %v504
      %522 = vadd.xlane.f32.xlu0 %v521
      %v523 = vpop.xlane.xlu0 %522
      %v524 = vadd.f32 %v505, %v506
      %525 = vadd.xlane.f32.xlu0 %v524
      %v526 = vpop.xlane.xlu0 %525
      %v527 = vsel %vm296, %v507, 0.0
      %v528 = vsel %vm296, %v508, 0.0
      %v529 = vadd.f32 %v527, %v528
      %530 = vadd.xlane.f32.xlu0 %v529
      %v531 = vpop.xlane.xlu0 %530
      %v532 = vadd.f32 %v481, %v482
      %533 = vadd.xlane.f32.xlu0 %v532
      %v534 = vpop.xlane.xlu0 %533
      %v535 = vadd.f32 %v483, %v484
      %536 = vadd.xlane.f32.xlu0 %v535
      %v537 = vpop.xlane.xlu0 %536
      %v538 = vadd.f32 %v485, %v486
      %539 = vadd.xlane.f32.xlu0 %v538
      %v540 = vpop.xlane.xlu0 %539
      %v541 = vadd.f32 %v487, %v488
      %542 = vadd.xlane.f32.xlu0 %v541
      %v543 = vpop.xlane.xlu0 %542
      %v544 = vadd.f32 %v489, %v490
      %545 = vadd.xlane.f32.xlu0 %v544
      %v546 = vpop.xlane.xlu0 %545
      %v547 = vadd.f32 %v491, %v492
      %548 = vadd.xlane.f32.xlu0 %v547
      %v549 = vpop.xlane.xlu0 %548
      %v550 = vsel %vm296, %v493, 0.0
      %v551 = vsel %vm296, %v494, 0.0
      %v552 = vadd.f32 %v550, %v551
      %553 = vadd.xlane.f32.xlu0 %v552
      %v554 = vpop.xlane.xlu0 %553
      %v555 = vsel %vm467, 1.0, 0.0
      %v556 = vsel %vm468, 1.0, 0.0
      %v557 = vsel %vm469, 1.0, 0.0
      %v558 = vsel %vm470, 1.0, 0.0
      %v559 = vsel %vm471, 1.0, 0.0
      %v560 = vsel %vm472, 1.0, 0.0
      %v561 = vsel %vm473, 1.0, 0.0
      %v562 = vsel %vm474, 1.0, 0.0
      %v563 = vsel %vm475, 1.0, 0.0
      %v564 = vsel %vm476, 1.0, 0.0
      %v565 = vsel %vm477, 1.0, 0.0
      %v566 = vsel %vm478, 1.0, 0.0
      %v567 = vsel %vm479, 1.0, 0.0
      %v568 = vsel %vm480, 1.0, 0.0
      %v569 = vadd.f32 %v555, %v556
      %570 = vadd.xlane.f32.xlu0 %v569
      %v571 = vpop.xlane.xlu0 %570
      %v572 = vadd.f32 %v557, %v558
      %573 = vadd.xlane.f32.xlu0 %v572
      %v574 = vpop.xlane.xlu0 %573
      %v575 = vadd.f32 %v559, %v560
      %576 = vadd.xlane.f32.xlu0 %v575
      %v577 = vpop.xlane.xlu0 %576
      %v578 = vadd.f32 %v561, %v562
      %579 = vadd.xlane.f32.xlu0 %v578
      %v580 = vpop.xlane.xlu0 %579
      %v581 = vadd.f32 %v563, %v564
      %582 = vadd.xlane.f32.xlu0 %v581
      %v583 = vpop.xlane.xlu0 %582
      %v584 = vadd.f32 %v565, %v566
      %585 = vadd.xlane.f32.xlu0 %v584
      %v586 = vpop.xlane.xlu0 %585
      %v587 = vsel %vm296, %v567, 0.0
      %v588 = vsel %vm296, %v568, 0.0
      %v589 = vadd.f32 %v587, %v588
      %590 = vadd.xlane.f32.xlu0 %v589
      %v591 = vpop.xlane.xlu0 %590
      %vm592 = vcmp.eq.s32.totalorder %v455, 0
      %vm593 = vcmp.eq.s32.totalorder %v455, 1
      %v594 = vsel %vm593, %v534, %v571
      %v595 = vsel %vm593, %v537, %v574
      %v596 = vsel %vm593, %v540, %v577
      %v597 = vsel %vm593, %v543, %v580
      %v598 = vsel %vm593, %v546, %v583
      %v599 = vsel %vm593, %v549, %v586
      %v600 = vsel %vm593, %v554, %v591
      %v601 = vsel %vm592, %v511, %v594
      %v602 = vsel %vm592, %v514, %v595
      %v603 = vsel %vm592, %v517, %v596
      %v604 = vsel %vm592, %v520, %v597
      %v605 = vsel %vm592, %v523, %v598
      %v606 = vsel %vm592, %v526, %v599
      %v607 = vsel %vm592, %v531, %v600
      %v608 = vld [vmem:[%s263] sm:$0xff]
      %v609 = vld [vmem:[%s263 + $0x8] sm:$0xff]
      %v610 = vld [vmem:[%s263 + $0x10] sm:$0xff]
      %v611 = vld [vmem:[%s263 + $0x18] sm:$0xff]
      %v612 = vld [vmem:[%s263 + $0x20] sm:$0xff]
      %v613 = vld [vmem:[%s263 + $0x28] sm:$0xff]
      %v614 = vld [vmem:[%s263 + $0x30] sm:$0x7f]
      %v615 = vadd.f32 %v608, %v601
      %v616 = vadd.f32 %v609, %v602
      %v617 = vadd.f32 %v610, %v603
      %v618 = vadd.f32 %v611, %v604
      %v619 = vadd.f32 %v612, %v605
      %v620 = vadd.f32 %v613, %v606
      %v621 = vadd.f32 %v614, %v607
      %vm622 = vcmask 23552
      %623 = vst.msk [vmem:[%s263] sm:$0xff] %vm622, %v615
      %624 = vst.msk [vmem:[%s263 + $0x8] sm:$0xff] %vm622, %v616
      %625 = vst.msk [vmem:[%s263 + $0x10] sm:$0xff] %vm622, %v617
      %626 = vst.msk [vmem:[%s263 + $0x18] sm:$0xff] %vm622, %v618
      %627 = vst.msk [vmem:[%s263 + $0x20] sm:$0xff] %vm622, %v619
      %628 = vst.msk [vmem:[%s263 + $0x28] sm:$0xff] %vm622, %v620
      %vm629 = vcmask 22528
      %630 = vst.msk [vmem:[%s263 + $0x30] sm:$0x7f] %vm629, %v621
      %p631 = scmp.lt.s32.totalorder %s18, 1
      %s632 = scalar_select %p631, %s18, 1
      %p633 = scmp.lt.s32.totalorder %s19, 1
      %s634 = scalar_select %p633, %s19, 1
      %s635 = smul.addr %s634, 7
      %s636 = smul.addr %s632, 14
      %s637 = sadd.s32 %s635, %s636
      %s638 = smul.addr %s637, 8
      %s639 = scalar_lea.vmem %s2, %s638
      // Predicated region
      $region33: #{tpu_custom_call.1} parent=27 // pred_check
        %p640 = pneg %p120
      $region34: #{tpu_custom_call.1} parent=27 // pred_check_branch
        %642 = sbr.rel (%p640) target = $region36
      $region35: #{tpu_custom_call.1} parent=27 // pred_region
        _
      $region36: #{tpu_custom_call.1} parent=27 // pred_fallthru
        _
    $region28: #{tpu_custom_call.1} parent=5 // pred_fallthru
      _
    %p643 = scmp.le.s32.totalorder 2, %s8
    // Predicated region
    $region37: #{tpu_custom_call.1} parent=5 // pred_check
      %p644 = pneg %p643
    $region38: #{tpu_custom_call.1} parent=5 // pred_check_branch
      %646 = sbr.rel (%p644) target = $region40
    $region39: #{tpu_custom_call.1} parent=5 // pred_region
      %s647 = ssub.s32 %s8, 2
      // Predicated region
      $region41: #{tpu_custom_call.1} parent=39 // pred_check
        %p648 = pneg %p126
      $region42: #{tpu_custom_call.1} parent=39 // pred_check_branch
        %650 = sbr.rel (%p648) target = $region44
      $region43: #{tpu_custom_call.1} parent=39 // pred_region
        %p651 = scmp.lt.s32.totalorder %s21, 1
        %s652 = scalar_select %p651, %s21, 1
        %p653 = scmp.lt.s32.totalorder %s22, 1
        %s654 = scalar_select %p653, %s22, 1
        %s655 = smul.addr %s654, 7
        %s656 = smul.addr %s652, 14
        %s657 = sadd.s32 %s655, %s656
        %s658 = smul.addr %s657, 8
        %s659 = scalar_lea.vmem %s2, %s658
      $region44: #{tpu_custom_call.1} parent=39 // pred_fallthru
        _
    $region40: #{tpu_custom_call.1} parent=5 // pred_fallthru
      _
  $region6: #{tpu_custom_call.1} parent=0 // loop_footer
    %s12 = sadd.s32 1, %s8
  $region7: #{tpu_custom_call.1} parent=0 // loop_footer_branch
    %7 = sbr.rel target = $region3
  $region8: #{tpu_custom_call.1} parent=0 // loop_exit
    _

</llo_original>
